<compile_context>
chip_gen: v5e
topology: v5e:2x2
jax: 0.10.0
libtpu: 0.0.40
codegen_flags: <defaults>
</compile_context>

<pallas_src>
import functools

import jax
import jax.numpy as jnp
from jax.experimental import pallas as pl
from jax.experimental.pallas import tpu as pltpu


def _vmem_capacity_bytes():
    """Physical per-core VMEM; conservative 64 MiB (v7x-sized) fallback."""
    try:
        info = pltpu.get_tpu_info()
        for name in ("vmem_capacity_bytes", "vmem_bytes", "vmem_size_bytes"):
            cap = getattr(info, name, None)
            if cap:
                return int(cap)
    except Exception:
        pass
    return 64 * 1024 * 1024


def _roll_lanes(x, shift, n):
    """Periodic roll along the trailing (lane) axis; static identity skip."""
    shift = shift % n
    if shift == 0:
        return x
    return pltpu.roll(x, shift=shift, axis=2)


def _spatial_derivative_kernel(f_ref, g_ref,
                               o1x_ref, o1y_ref, o2x_ref, o2y_ref, *, H, W):
    HW = H * W
    f = f_ref[...]                                   # (1, TC, H*W)
    g = g_ref[...]                                   # (1, Cg, H*W)
    cg = g.shape[1]

    # Reciprocal spacings as (1, 1, H*W) planes; broadcast implicitly below
    # (no full-tile materialization).  Fold the 0.5 of the central diffs in.
    dxr = 1.0 / g[:, 0:1, :]
    dyr = 1.0 / g[:, cg - 1:cg, :]
    dxr_half = 0.5 * dxr
    dyr_half = 0.5 * dyr

    # Periodic neighbours on the flattened lane axis.  Rolling by +/-W is
    # exactly the periodic roll along H; rolling by +/-1 is the periodic roll
    # along W except at the first/last column, which gets a fixed-up roll.
    f_ip1 = _roll_lanes(f, HW - W, HW)               # f[(i+1) % H, j]
    f_im1 = _roll_lanes(f, W, HW)                    # f[(i-1) % H, j]

    col = jax.lax.broadcasted_iota(jnp.int32, (1, 1, HW), 2) % W
    f_jp1 = jnp.where(col == W - 1,
                      _roll_lanes(f, W - 1, HW),
                      _roll_lanes(f, HW - 1, HW))    # f[i, (j+1) % W]
    f_jm1 = jnp.where(col == 0,
                      _roll_lanes(f, HW - W + 1, HW),
                      _roll_lanes(f, 1, HW))         # f[i, (j-1) % W]

    o1x_ref[...] = ((f_ip1 - f) * dxr).astype(o1x_ref.dtype)
    o1y_ref[...] = ((f_jp1 - f) * dyr).astype(o1y_ref.dtype)
    o2x_ref[...] = ((f_ip1 - f_im1) * dxr_half).astype(o2x_ref.dtype)
    o2y_ref[...] = ((f_jp1 - f_jm1) * dyr_half).astype(o2y_ref.dtype)


def _pick_channel_tile(B, C, HW, in_item, out_item, tile_budget_bytes):
    """Channel-tile: pipeline buffers plus in-kernel temporaries must fit."""
    tmp_item = max(in_item, out_item, 4)
    # 2x double-buffered input + 2x 4 double-buffered outputs + ~7 live temps
    # (f, 4 neighbours, diffs/products) per channel of the tile.
    per_channel = HW * (2 * in_item + 8 * out_item + 7 * tmp_item)
    tc_max = max(1, tile_budget_bytes // per_channel)
    if C <= tc_max:
        tc = C
    else:
        # When TC < C the sublane block dim must be a multiple of 8.
        tc = min(C, max(8, (tc_max // 8) * 8))
    # v7x has 2 TensorCores sharing HBM: keep >= 2 parallel grid points.
    if B * (-(-C // tc)) < 2:
        cand = ((-(-C // 2)) // 8) * 8
        if 8 <= cand < C:
            tc = cand
    return tc, per_channel


def spatial_derivative(f, grid, boundary_mode="periodic", boundary_value=0):
    """f: (B, C, H, W); grid: scalar or (B, Cg, H, W). Returns 4 arrays (B,C,H,W)."""
    # TODO(synk): only the 'periodic' boundary mode is implemented.
    assert boundary_mode == "periodic", "only periodic boundary implemented"
    B, C, H, W = f.shape
    HW = H * W

    if isinstance(grid, (int, float)):
        grid = jnp.full((B, 1, H, W), grid, dtype=f.dtype)
    assert grid.ndim == 4 and grid.shape[0] == B and grid.shape[2:] == (H, W)
    Cg = grid.shape[1]

    out_dtype = jnp.result_type(f.dtype, grid.dtype)
    in_item = jnp.dtype(f.dtype).itemsize
    out_item = jnp.dtype(out_dtype).itemsize

    cap = _vmem_capacity_bytes()
    vmem_limit = min(cap * 3 // 4, 100 * 1024 * 1024)     # ~96 MiB on 128 MiB parts, 48 MiB on v7x
    tile_budget = vmem_limit - 4 * 1024 * 1024            # headroom: grid planes, sems, misc
    tc, per_channel = _pick_channel_tile(B, C, HW, in_item, out_item, tile_budget)
    # Best effort if even the minimal legal tile overshoots the default budget.
    vmem_limit = int(min(cap - 8 * 1024 * 1024,
                         max(vmem_limit, tc * per_channel + 4 * 1024 * 1024)))
    num_c_tiles = pl.cdiv(C, tc)

    # Flatten (H, W) into one lane axis: free contiguous reshape, makes every
    # load/store lane-dense (last dim H*W instead of W).
    f_flat = f.reshape(B, C, HW)
    g_flat = grid.reshape(B, Cg, HW)

    f_spec = pl.BlockSpec((1, tc, HW), lambda b, c: (b, c, 0))
    g_spec = pl.BlockSpec((1, Cg, HW), lambda b, c: (b, 0, 0))   # resident across c

    out_sds = jax.ShapeDtypeStruct((B, C, HW), out_dtype)
    kernel = functools.partial(_spatial_derivative_kernel, H=H, W=W)

    # TODO(synk): for very large single planes (e.g. 1024x1024 f32 on v7x) even
    # TC=1 exceeds the VMEM budget; tile H with a 1-row periodic halo via
    # manual make_async_copy in that regime.
    outs = pl.pallas_call(
        kernel,
        out_shape=(out_sds, out_sds, out_sds, out_sds),
        grid_spec=pltpu.PrefetchScalarGridSpec(
            num_scalar_prefetch=0,
            grid=(B, num_c_tiles),
            in_specs=[f_spec, g_spec],
            out_specs=[f_spec, f_spec, f_spec, f_spec],
        ),
        compiler_params=pltpu.CompilerParams(
            dimension_semantics=("parallel", "parallel"),
            vmem_limit_bytes=vmem_limit,
        ),
    )(f_flat, g_flat)

    return tuple(o.reshape(B, C, H, W) for o in outs)


def _reference(f, grid):
    """Pure-JAX reference mirroring the PyTorch module (periodic mode)."""
    d1x = jnp.roll(f, -1, axis=2) - f
    d1y = jnp.roll(f, -1, axis=3) - f
    d1x_b = f - jnp.roll(f, 1, axis=2)
    d1y_b = f - jnp.roll(f, 1, axis=3)
    d2x = 0.5 * (d1x + d1x_b)
    d2y = 0.5 * (d1y + d1y_b)
    dxr = 1.0 / grid[:, :1]
    dyr = 1.0 / grid[:, -1:]
    return d1x * dxr, d1y * dyr, d2x * dxr, d2y * dyr


if __name__ == "__main__":
    B, C, H, W = 2, 4, 16, 16
    key = jax.random.PRNGKey(0)
    kf, kg = jax.random.split(key)
    f = jax.random.normal(kf, (B, C, H, W), dtype=jnp.float32)
    # grid: strictly positive spacings, shape (B, 2, H, W) like the PyTorch case
    grid = 0.5 + jax.random.uniform(kg, (B, 2, H, W), dtype=jnp.float32)

    outs = spatial_derivative(f, grid, boundary_mode="periodic")
    outs = jax.block_until_ready(outs)

    refs = _reference(f, grid)
    for o, r in zip(outs, refs):
        assert o.shape == (B, C, H, W)
        assert o.dtype == f.dtype
        assert jnp.allclose(o, r, atol=1e-5, rtol=1e-5), "mismatch vs reference"

    print("KERNEL_OK")
</pallas_src>

<mosaic_0001>
module attributes {stable_mosaic.version = 11 : i64} {
  func.func @_spatial_derivative_kernel(%arg0: i32, %arg1: i32, %arg2: memref<1x4x256xf32, #tpu.memory_space<vmem>>, %arg3: memref<1x2x256xf32, #tpu.memory_space<vmem>>, %arg4: memref<1x4x256xf32, #tpu.memory_space<vmem>>, %arg5: memref<1x4x256xf32, #tpu.memory_space<vmem>>, %arg6: memref<1x4x256xf32, #tpu.memory_space<vmem>>, %arg7: memref<1x4x256xf32, #tpu.memory_space<vmem>>) attributes {dimension_semantics = [#tpu.dimension_semantics<parallel>, #tpu.dimension_semantics<parallel>], iteration_bounds = array<i64: 2, 1>, scalar_prefetch = 0 : i64, scratch_operands = 0 : i64, tpu.core_type = #tpu.core_type<tc>, window_params = [{transform_indices = @transform_0, window_bounds = array<i64: 1, 4, 256>}, {transform_indices = @transform_1, window_bounds = array<i64: 1, 2, 256>}, {transform_indices = @transform_2, window_bounds = array<i64: 1, 4, 256>}, {transform_indices = @transform_3, window_bounds = array<i64: 1, 4, 256>}, {transform_indices = @transform_4, window_bounds = array<i64: 1, 4, 256>}, {transform_indices = @transform_5, window_bounds = array<i64: 1, 4, 256>}]} {
    %c0 = arith.constant 0 : index
    %c0_0 = arith.constant 0 : index
    %c0_1 = arith.constant 0 : index
    %0 = vector.load %arg2[%c0, %c0_0, %c0_1] : memref<1x4x256xf32, #tpu.memory_space<vmem>>, vector<1x4x256xf32>
    %c0_2 = arith.constant 0 : index
    %c0_3 = arith.constant 0 : index
    %c0_4 = arith.constant 0 : index
    %1 = vector.load %arg3[%c0_2, %c0_3, %c0_4] : memref<1x2x256xf32, #tpu.memory_space<vmem>>, vector<1x2x256xf32>
    %2 = vector.extract_strided_slice %1 {offsets = [0, 0, 0], sizes = [1, 1, 256], strides = [1, 1, 1]} : vector<1x2x256xf32> to vector<1x1x256xf32>
    %cst = arith.constant 1.000000e+00 : f32
    %3 = vector.broadcast %cst : f32 to vector<1x1x256xf32>
    %4 = arith.divf %3, %2 : vector<1x1x256xf32>
    %5 = vector.extract_strided_slice %1 {offsets = [0, 1, 0], sizes = [1, 1, 256], strides = [1, 1, 1]} : vector<1x2x256xf32> to vector<1x1x256xf32>
    %cst_5 = arith.constant 1.000000e+00 : f32
    %6 = vector.broadcast %cst_5 : f32 to vector<1x1x256xf32>
    %7 = arith.divf %6, %5 : vector<1x1x256xf32>
    %cst_6 = arith.constant 5.000000e-01 : f32
    %8 = vector.broadcast %cst_6 : f32 to vector<1x1x256xf32>
    %9 = arith.mulf %8, %4 : vector<1x1x256xf32>
    %cst_7 = arith.constant 5.000000e-01 : f32
    %10 = vector.broadcast %cst_7 : f32 to vector<1x1x256xf32>
    %11 = arith.mulf %10, %7 : vector<1x1x256xf32>
    %c240_i32 = arith.constant 240 : i32
    %12 = tpu.dynamic_rotate %0 by %c240_i32 dim 2 : vector<1x4x256xf32>, i32 -> vector<1x4x256xf32>
    %c16_i32 = arith.constant 16 : i32
    %13 = tpu.dynamic_rotate %0 by %c16_i32 dim 2 : vector<1x4x256xf32>, i32 -> vector<1x4x256xf32>
    %14 = tpu.iota {dimensions = array<i32: 2>} : vector<1x1x256xi32>
    %c16_i32_8 = arith.constant 16 : i32
    %c0_i32 = arith.constant 0 : i32
    %15 = arith.cmpi eq, %c16_i32_8, %c0_i32 : i32
    %c1_i32 = arith.constant 1 : i32
    %16 = arith.select %15, %c1_i32, %c16_i32_8 : i32
    %17 = vector.broadcast %16 : i32 to vector<1x1x256xi32>
    %18 = arith.remsi %14, %17 : vector<1x1x256xi32>
    %c0_i32_9 = arith.constant 0 : i32
    %19 = vector.broadcast %c0_i32_9 : i32 to vector<1x1x256xi32>
    %20 = arith.cmpi ne, %18, %19 : vector<1x1x256xi32>
    %c0_i32_10 = arith.constant 0 : i32
    %21 = vector.broadcast %c0_i32_10 : i32 to vector<1x1x256xi32>
    %22 = arith.cmpi slt, %18, %21 : vector<1x1x256xi32>
    %c0_i32_11 = arith.constant 0 : i32
    %23 = arith.cmpi slt, %16, %c0_i32_11 : i32
    %24 = vector.broadcast %23 : i1 to vector<1x1x256xi1>
    %25 = vector.broadcast %24 : vector<1x1x256xi1> to vector<1x1x256xi1>
    %26 = arith.xori %22, %25 : vector<1x1x256xi1>
    %27 = arith.andi %26, %20 : vector<1x1x256xi1>
    %28 = vector.broadcast %16 : i32 to vector<1x1x256xi32>
    %29 = arith.addi %18, %28 : vector<1x1x256xi32>
    %30 = arith.select %27, %29, %18 : vector<1x1x256xi1>, vector<1x1x256xi32>
    %c15_i32 = arith.constant 15 : i32
    %31 = vector.broadcast %c15_i32 : i32 to vector<1x1x256xi32>
    %32 = arith.cmpi eq, %30, %31 : vector<1x1x256xi32>
    %c15_i32_12 = arith.constant 15 : i32
    %33 = tpu.dynamic_rotate %0 by %c15_i32_12 dim 2 : vector<1x4x256xf32>, i32 -> vector<1x4x256xf32>
    %c255_i32 = arith.constant 255 : i32
    %34 = tpu.dynamic_rotate %0 by %c255_i32 dim 2 : vector<1x4x256xf32>, i32 -> vector<1x4x256xf32>
    %35 = vector.shape_cast %32 : vector<1x1x256xi1> to vector<1x1x256xi1>
    %36 = vector.broadcast %35 : vector<1x1x256xi1> to vector<1x4x256xi1>
    %37 = arith.select %36, %33, %34 : vector<1x4x256xi1>, vector<1x4x256xf32>
    %c0_i32_13 = arith.constant 0 : i32
    %38 = vector.broadcast %c0_i32_13 : i32 to vector<1x1x256xi32>
    %39 = arith.cmpi eq, %30, %38 : vector<1x1x256xi32>
    %c241_i32 = arith.constant 241 : i32
    %40 = tpu.dynamic_rotate %0 by %c241_i32 dim 2 : vector<1x4x256xf32>, i32 -> vector<1x4x256xf32>
    %c1_i32_14 = arith.constant 1 : i32
    %41 = tpu.dynamic_rotate %0 by %c1_i32_14 dim 2 : vector<1x4x256xf32>, i32 -> vector<1x4x256xf32>
    %42 = vector.shape_cast %39 : vector<1x1x256xi1> to vector<1x1x256xi1>
    %43 = vector.broadcast %42 : vector<1x1x256xi1> to vector<1x4x256xi1>
    %44 = arith.select %43, %40, %41 : vector<1x4x256xi1>, vector<1x4x256xf32>
    %45 = arith.subf %12, %0 : vector<1x4x256xf32>
    %46 = vector.broadcast %4 : vector<1x1x256xf32> to vector<1x4x256xf32>
    %47 = arith.mulf %45, %46 : vector<1x4x256xf32>
    %c0_15 = arith.constant 0 : index
    %c0_16 = arith.constant 0 : index
    %c0_17 = arith.constant 0 : index
    %48 = vector.load %arg4[%c0_15, %c0_16, %c0_17] : memref<1x4x256xf32, #tpu.memory_space<vmem>>, vector<1x4x256xf32>
    tpu.vector_store %arg4[%c0_15, %c0_16, %c0_17], %47 {strides = array<i32>} : memref<1x4x256xf32, #tpu.memory_space<vmem>>, vector<1x4x256xf32>,
    %49 = arith.subf %37, %0 : vector<1x4x256xf32>
    %50 = vector.broadcast %7 : vector<1x1x256xf32> to vector<1x4x256xf32>
    %51 = arith.mulf %49, %50 : vector<1x4x256xf32>
    %c0_18 = arith.constant 0 : index
    %c0_19 = arith.constant 0 : index
    %c0_20 = arith.constant 0 : index
    %52 = vector.load %arg5[%c0_18, %c0_19, %c0_20] : memref<1x4x256xf32, #tpu.memory_space<vmem>>, vector<1x4x256xf32>
    tpu.vector_store %arg5[%c0_18, %c0_19, %c0_20], %51 {strides = array<i32>} : memref<1x4x256xf32, #tpu.memory_space<vmem>>, vector<1x4x256xf32>,
    %53 = arith.subf %12, %13 : vector<1x4x256xf32>
    %54 = vector.broadcast %9 : vector<1x1x256xf32> to vector<1x4x256xf32>
    %55 = arith.mulf %53, %54 : vector<1x4x256xf32>
    %c0_21 = arith.constant 0 : index
    %c0_22 = arith.constant 0 : index
    %c0_23 = arith.constant 0 : index
    %56 = vector.load %arg6[%c0_21, %c0_22, %c0_23] : memref<1x4x256xf32, #tpu.memory_space<vmem>>, vector<1x4x256xf32>
    tpu.vector_store %arg6[%c0_21, %c0_22, %c0_23], %55 {strides = array<i32>} : memref<1x4x256xf32, #tpu.memory_space<vmem>>, vector<1x4x256xf32>,
    %57 = arith.subf %37, %44 : vector<1x4x256xf32>
    %58 = vector.broadcast %11 : vector<1x1x256xf32> to vector<1x4x256xf32>
    %59 = arith.mulf %57, %58 : vector<1x4x256xf32>
    %c0_24 = arith.constant 0 : index
    %c0_25 = arith.constant 0 : index
    %c0_26 = arith.constant 0 : index
    %60 = vector.load %arg7[%c0_24, %c0_25, %c0_26] : memref<1x4x256xf32, #tpu.memory_space<vmem>>, vector<1x4x256xf32>
    tpu.vector_store %arg7[%c0_24, %c0_25, %c0_26], %59 {strides = array<i32>} : memref<1x4x256xf32, #tpu.memory_space<vmem>>, vector<1x4x256xf32>,
    return
  }
  func.func @transform_0(%arg0: i32, %arg1: i32) -> (i32, i32, i32) {
    %c0_i32 = arith.constant 0 : i32
    %c0_i32_0 = arith.constant 0 : i32
    return %arg0, %arg1, %c0_i32 : i32, i32, i32
  }
  func.func @transform_1(%arg0: i32, %arg1: i32) -> (i32, i32, i32) {
    %c0_i32 = arith.constant 0 : i32
    %c0_i32_0 = arith.constant 0 : i32
    %c0_i32_1 = arith.constant 0 : i32
    return %arg0, %c0_i32, %c0_i32_0 : i32, i32, i32
  }
  func.func @transform_2(%arg0: i32, %arg1: i32) -> (i32, i32, i32) {
    %c0_i32 = arith.constant 0 : i32
    %c0_i32_0 = arith.constant 0 : i32
    return %arg0, %arg1, %c0_i32 : i32, i32, i32
  }
  func.func @transform_3(%arg0: i32, %arg1: i32) -> (i32, i32, i32) {
    %c0_i32 = arith.constant 0 : i32
    %c0_i32_0 = arith.constant 0 : i32
    return %arg0, %arg1, %c0_i32 : i32, i32, i32
  }
  func.func @transform_4(%arg0: i32, %arg1: i32) -> (i32, i32, i32) {
    %c0_i32 = arith.constant 0 : i32
    %c0_i32_0 = arith.constant 0 : i32
    return %arg0, %arg1, %c0_i32 : i32, i32, i32
  }
  func.func @transform_5(%arg0: i32, %arg1: i32) -> (i32, i32, i32) {
    %c0_i32 = arith.constant 0 : i32
    %c0_i32_0 = arith.constant 0 : i32
    return %arg0, %arg1, %c0_i32 : i32, i32, i32
  }
}

</mosaic_0001>

<llo_original>
// kernel: tpu_custom_call.1
$region0: #{tpu_custom_call.1}
  #allocation0 [shape = 'u32[]', space=smem, size = 0x4, offset = 0x4, fixed_abs, tag = 'smem constant byte address 0x4 - core index']
  #allocation1 [shape = 'u32[72,128]{1,0:T(1,128)}', space=vmem, size = 0x9000, scoped, tag = 'internal scratch']
  %s0 = inlined_call_operand.hbm [shape: f32[2,4,256], index: 0, kind: input, shape index: {}]
  %s1 = inlined_call_operand.hbm [shape: f32[2,2,256], index: 1, kind: input, shape index: {}]
  %s2 = inlined_call_operand.hbm [shape: f32[2,4,256], index: 2, kind: output, shape index: {0}]
  %s3 = inlined_call_operand.hbm [shape: f32[2,4,256], index: 3, kind: output, shape index: {1}]
  %s4 = inlined_call_operand.hbm [shape: f32[2,4,256], index: 4, kind: output, shape index: {2}]
  %s5 = inlined_call_operand.hbm [shape: f32[2,4,256], index: 5, kind: output, shape index: {3}]
  %6 = xla_tuple %s2, %s3, %s4, %s5
  %s7 = sld [smem:[#allocation0]]
  $region73: #{tpu_custom_call.1} parent=0
    _
  %s9 = ssub.s32 1, %s7
  %s10 = scalar_select 0, %s9, %s7
  $region1: #{tpu_custom_call.1} parent=0
    #allocation2 [shape = 'u8[8192]{0}', space=vmem, size = 0x2000, scoped, tag = 'input window, operand 0']
    #allocation3 [shape = 's32[2]{0}', space=sflag, size = 0x8, scoped, tag = 'scoped memory for tpu_custom_call.1']
    #allocation4 [shape = 's32[2]{0}', space=sflag, size = 0x8, scoped, tag = 'scoped memory for tpu_custom_call.1']
    #allocation5 [shape = 'u8[4096]{0}', space=vmem, size = 0x1000, scoped, tag = 'input window, operand 1']
    #allocation6 [shape = 's32[2]{0}', space=sflag, size = 0x8, scoped, tag = 'scoped memory for tpu_custom_call.1']
    #allocation7 [shape = 'u8[8192]{0}', space=vmem, size = 0x2000, scoped, tag = 'output window, operand 0']
    #allocation8 [shape = 'u8[8192]{0}', space=vmem, size = 0x2000, scoped, tag = 'output window, operand 1']
    #allocation9 [shape = 's32[2]{0}', space=sflag, size = 0x8, scoped, tag = 'scoped memory for tpu_custom_call.1']
    #allocation10 [shape = 'u8[8192]{0}', space=vmem, size = 0x2000, scoped, tag = 'output window, operand 2']
    #allocation11 [shape = 'u8[8192]{0}', space=vmem, size = 0x2000, scoped, tag = 'output window, operand 3']
    #allocation12 [shape = 's32[2]{0}', space=sflag, size = 0x8, scoped, tag = 'scoped memory for tpu_custom_call.1']
    %11 = vsyncpa [#allocation3], 0
    %s12 = scalar_lea.sflag [#allocation3], 1
    %13 = vsyncpa %s12, 0
    %14 = vsyncpa [#allocation6], 0
    %s15 = scalar_lea.sflag [#allocation6], 1
    %16 = vsyncpa %s15, 0
    %17 = vsyncpa [#allocation4], 0
    %s18 = scalar_lea.sflag [#allocation4], 1
    %19 = vsyncpa %s18, 0
    %20 = vsyncpa [#allocation9], 0
    %s21 = scalar_lea.sflag [#allocation9], 1
    %22 = vsyncpa %s21, 0
    %23 = vsyncpa [#allocation12], 0
    %s24 = scalar_lea.sflag [#allocation12], 1
    %25 = vsyncpa %s24, 0
    loop: start=0, step=1, limit=4
    $region2: #{tpu_custom_call.1} parent=1 // loop_pre_header
      _
    $region3: #{tpu_custom_call.1} parent=1 // loop_header
      %s27 = sphi 0, %s31
      %p28 = scmp.ge.s32.totalorder %s27, 4
      %s34 = sphi 0, %s46
      %s35 = sphi 0, %s42
      %s36 = sphi 0, %s34
      %s37 = sphi 0, %s35
      %s38 = sphi 0, %s36
      %s39 = sphi 0, %s37
      %s51 = sphi 0, %s53
      %s54 = sphi 0, %s51
      %s55 = sphi 0, %s54
      %s71 = sphi 0, %s55
      %s77 = sphi 0, %s79
      %s80 = sphi 0, %s77
      %s81 = sphi 0, %s80
      %s97 = sphi 0, %s81
      %s105 = sphi 0, %s107
      %s108 = sphi 0, %s105
      %s109 = sphi 0, %s108
      %s125 = sphi 0, %s109
      %s133 = sphi 0, %s135
      %s136 = sphi 0, %s133
      %s137 = sphi 0, %s136
      %s153 = sphi 0, %s137
      %s161 = sphi 0, %s163
      %s164 = sphi 0, %s161
      %s165 = sphi 0, %s164
      %s181 = sphi 0, %s165
      %s189 = sphi 0, %s191
      %s192 = sphi 0, %s189
      %s193 = sphi 0, %s192
      %s209 = sphi 0, %s193
    $region4: #{tpu_custom_call.1} parent=1 // loop_header_branch
      %30 = sbr.rel (%p28) target = $region8
    $region5: #{tpu_custom_call.1} parent=1 // loop_body
      %s32 = ssub.s32 %s27, 1
      %s33 = ssub.s32 %s27, 2
      %s40 = sadd.s32 1, %s35
      %p41 = scmp.ge.s32.totalorder %s40, 1
      %s42 = scalar_select %p41, 0, %s40
      %s43 = sadd.s32 1, %s34
      %s44 = scalar_select %p41, %s43, %s34
      %p45 = scmp.ge.s32.totalorder %s44, 2
      %s46 = scalar_select %p45, 0, %s44
      %s47 = ssub.s32 %s34, %s46
      %s48 = ssub.s32 %s35, %s42
      %s49 = sor.u32 %s47, %s48
      %p50 = scmp.eq.s32.totalorder %s49, 0
      %s52 = sadd.s32 %s51, 1
      %s53 = scalar_select %p50, %s51, %s52
      %p56 = pneg %p50
      %p57 = scmp.eq.s32.totalorder %s27, 1
      %p58 = por %p56, %p57
      %p59 = scmp.ne.s32.totalorder %s51, %s54
      %p60 = scmp.eq.s32.totalorder %s27, 0
      %p61 = por %p59, %p60
      %p62 = scmp.ne.s32.totalorder %s51, %s54
      %p63 = scmp.eq.s32.totalorder %s32, 1
      %p64 = por %p62, %p63
      %p65 = scmp.ne.s32.totalorder %s54, %s55
      %p66 = scmp.eq.s32.totalorder %s32, 0
      %p67 = por %p65, %p66
      %p68 = scmp.ne.s32.totalorder %s54, %s55
      %p69 = scmp.eq.s32.totalorder %s33, 1
      %p70 = por %p68, %p69
      %p72 = scmp.ne.s32.totalorder %s55, %s71
      %p73 = scmp.eq.s32.totalorder %s33, 0
      %p74 = por %p72, %p73
      %s75 = ssub.s32 %s34, %s46
      %p76 = scmp.eq.s32.totalorder %s75, 0
      %s78 = sadd.s32 %s77, 1
      %s79 = scalar_select %p76, %s77, %s78
      %p82 = pneg %p76
      %p83 = scmp.eq.s32.totalorder %s27, 1
      %p84 = por %p82, %p83
      %p85 = scmp.ne.s32.totalorder %s77, %s80
      %p86 = scmp.eq.s32.totalorder %s27, 0
      %p87 = por %p85, %p86
      %p88 = scmp.ne.s32.totalorder %s77, %s80
      %p89 = scmp.eq.s32.totalorder %s32, 1
      %p90 = por %p88, %p89
      %p91 = scmp.ne.s32.totalorder %s80, %s81
      %p92 = scmp.eq.s32.totalorder %s32, 0
      %p93 = por %p91, %p92
      %p94 = scmp.ne.s32.totalorder %s80, %s81
      %p95 = scmp.eq.s32.totalorder %s33, 1
      %p96 = por %p94, %p95
      %p98 = scmp.ne.s32.totalorder %s81, %s97
      %p99 = scmp.eq.s32.totalorder %s33, 0
      %p100 = por %p98, %p99
      %s101 = ssub.s32 %s34, %s46
      %s102 = ssub.s32 %s35, %s42
      %s103 = sor.u32 %s101, %s102
      %p104 = scmp.eq.s32.totalorder %s103, 0
      %s106 = sadd.s32 %s105, 1
      %s107 = scalar_select %p104, %s105, %s106
      %p110 = pneg %p104
      %p111 = scmp.eq.s32.totalorder %s27, 1
      %p112 = por %p110, %p111
      %p113 = scmp.ne.s32.totalorder %s105, %s108
      %p114 = scmp.eq.s32.totalorder %s27, 0
      %p115 = por %p113, %p114
      %p116 = scmp.ne.s32.totalorder %s105, %s108
      %p117 = scmp.eq.s32.totalorder %s32, 1
      %p118 = por %p116, %p117
      %p119 = scmp.ne.s32.totalorder %s108, %s109
      %p120 = scmp.eq.s32.totalorder %s32, 0
      %p121 = por %p119, %p120
      %p122 = scmp.ne.s32.totalorder %s108, %s109
      %p123 = scmp.eq.s32.totalorder %s33, 1
      %p124 = por %p122, %p123
      %p126 = scmp.ne.s32.totalorder %s109, %s125
      %p127 = scmp.eq.s32.totalorder %s33, 0
      %p128 = por %p126, %p127
      %s129 = ssub.s32 %s34, %s46
      %s130 = ssub.s32 %s35, %s42
      %s131 = sor.u32 %s129, %s130
      %p132 = scmp.eq.s32.totalorder %s131, 0
      %s134 = sadd.s32 %s133, 1
      %s135 = scalar_select %p132, %s133, %s134
      %p138 = pneg %p132
      %p139 = scmp.eq.s32.totalorder %s27, 1
      %p140 = por %p138, %p139
      %p141 = scmp.ne.s32.totalorder %s133, %s136
      %p142 = scmp.eq.s32.totalorder %s27, 0
      %p143 = por %p141, %p142
      %p144 = scmp.ne.s32.totalorder %s133, %s136
      %p145 = scmp.eq.s32.totalorder %s32, 1
      %p146 = por %p144, %p145
      %p147 = scmp.ne.s32.totalorder %s136, %s137
      %p148 = scmp.eq.s32.totalorder %s32, 0
      %p149 = por %p147, %p148
      %p150 = scmp.ne.s32.totalorder %s136, %s137
      %p151 = scmp.eq.s32.totalorder %s33, 1
      %p152 = por %p150, %p151
      %p154 = scmp.ne.s32.totalorder %s137, %s153
      %p155 = scmp.eq.s32.totalorder %s33, 0
      %p156 = por %p154, %p155
      %s157 = ssub.s32 %s34, %s46
      %s158 = ssub.s32 %s35, %s42
      %s159 = sor.u32 %s157, %s158
      %p160 = scmp.eq.s32.totalorder %s159, 0
      %s162 = sadd.s32 %s161, 1
      %s163 = scalar_select %p160, %s161, %s162
      %p166 = pneg %p160
      %p167 = scmp.eq.s32.totalorder %s27, 1
      %p168 = por %p166, %p167
      %p169 = scmp.ne.s32.totalorder %s161, %s164
      %p170 = scmp.eq.s32.totalorder %s27, 0
      %p171 = por %p169, %p170
      %p172 = scmp.ne.s32.totalorder %s161, %s164
      %p173 = scmp.eq.s32.totalorder %s32, 1
      %p174 = por %p172, %p173
      %p175 = scmp.ne.s32.totalorder %s164, %s165
      %p176 = scmp.eq.s32.totalorder %s32, 0
      %p177 = por %p175, %p176
      %p178 = scmp.ne.s32.totalorder %s164, %s165
      %p179 = scmp.eq.s32.totalorder %s33, 1
      %p180 = por %p178, %p179
      %p182 = scmp.ne.s32.totalorder %s165, %s181
      %p183 = scmp.eq.s32.totalorder %s33, 0
      %p184 = por %p182, %p183
      %s185 = ssub.s32 %s34, %s46
      %s186 = ssub.s32 %s35, %s42
      %s187 = sor.u32 %s185, %s186
      %p188 = scmp.eq.s32.totalorder %s187, 0
      %s190 = sadd.s32 %s189, 1
      %s191 = scalar_select %p188, %s189, %s190
      %p194 = pneg %p188
      %p195 = scmp.eq.s32.totalorder %s27, 1
      %p196 = por %p194, %p195
      %p197 = scmp.ne.s32.totalorder %s189, %s192
      %p198 = scmp.eq.s32.totalorder %s27, 0
      %p199 = por %p197, %p198
      %p200 = scmp.ne.s32.totalorder %s189, %s192
      %p201 = scmp.eq.s32.totalorder %s32, 1
      %p202 = por %p200, %p201
      %p203 = scmp.ne.s32.totalorder %s192, %s193
      %p204 = scmp.eq.s32.totalorder %s32, 0
      %p205 = por %p203, %p204
      %p206 = scmp.ne.s32.totalorder %s192, %s193
      %p207 = scmp.eq.s32.totalorder %s33, 1
      %p208 = por %p206, %p207
      %p210 = scmp.ne.s32.totalorder %s193, %s209
      %p211 = scmp.eq.s32.totalorder %s33, 0
      %p212 = por %p210, %p211
      %p213 = scmp.le.s32.totalorder 1, %s27
      %p214 = scmp.lt.s32.totalorder %s27, 3
      %p215 = pnand %p213, %p214
      %p216 = pneg %p215
      // Predicated region
      $region9: #{tpu_custom_call.1} parent=5 // pred_check
        _
      $region10: #{tpu_custom_call.1} parent=5 // pred_check_branch
        %218 = sbr.rel (%p215) target = $region12
      $region11: #{tpu_custom_call.1} parent=5 // pred_region
        %s219 = ssub.s32 %s27, 1
      $region12: #{tpu_custom_call.1} parent=5 // pred_fallthru
        _
      %p220 = scmp.lt.s32.totalorder %s27, 2
      // Predicated region
      $region13: #{tpu_custom_call.1} parent=5 // pred_check
        %p221 = pneg %p220
      $region14: #{tpu_custom_call.1} parent=5 // pred_check_branch
        %223 = sbr.rel (%p221) target = $region16
      $region15: #{tpu_custom_call.1} parent=5 // pred_region
        // Predicated region
        $region17: #{tpu_custom_call.1} parent=15 // pred_check
          %p224 = pneg %p61
        $region18: #{tpu_custom_call.1} parent=15 // pred_check_branch
          %226 = sbr.rel (%p224) target = $region20
        $region19: #{tpu_custom_call.1} parent=15 // pred_region
          %s227 = sand.u32 %s51, 1
          %s228 = scalar_lea.sflag [#allocation3], %s227
          %s229 = sand.u32 %s51, 1
          %s230 = smul.addr %s229, 8
          %s231 = scalar_lea.vmem [#allocation2], %s230
          %233 = vsyncadd %s228, 0
          %s234 = smul.addr %s35, 2
          %s235 = smul.addr %s34, 2
          %s236 = sadd.s32 %s234, %s235
          %s237 = smul.addr %s236, 4
          %s238 = scalar_lea.hbm %s0, %s237
          %s240 = sshll.u32 %s238, 4
          %s241 = int_to_ptr.hbm [resolvable:$true] %s240
          %s242 = sshll.u32 %s231, 4
          %s243 = int_to_ptr.vmem [resolvable:$true] %s242
          %245 = dma.hbm_to_vmem [thread:$0]  %s241, 128, %s243, %s228
        $region20: #{tpu_custom_call.1} parent=15 // pred_fallthru
          _
        // Predicated region
        $region21: #{tpu_custom_call.1} parent=15 // pred_check
          %p246 = pneg %p87
        $region22: #{tpu_custom_call.1} parent=15 // pred_check_branch
          %248 = sbr.rel (%p246) target = $region24
        $region23: #{tpu_custom_call.1} parent=15 // pred_region
          %s249 = sand.u32 %s77, 1
          %s250 = scalar_lea.sflag [#allocation6], %s249
          %s251 = sand.u32 %s77, 1
          %s252 = smul.addr %s251, 4
          %s253 = scalar_lea.vmem [#allocation5], %s252
          %255 = vsyncadd %s250, 0
          %s256 = smul.addr %s34, 2
          %s257 = smul.addr %s256, 2
          %s258 = scalar_lea.hbm %s1, %s257
          %s260 = sshll.u32 %s258, 4
          %s261 = int_to_ptr.hbm [resolvable:$true] %s260
          %s262 = sshll.u32 %s253, 4
          %s263 = int_to_ptr.vmem [resolvable:$true] %s262
          %265 = dma.hbm_to_vmem [thread:$0]  %s261, 64, %s263, %s250
        $region24: #{tpu_custom_call.1} parent=15 // pred_fallthru
          _
      $region16: #{tpu_custom_call.1} parent=5 // pred_fallthru
        _
      %p266 = scmp.le.s32.totalorder 1, %s27
      %p267 = scmp.lt.s32.totalorder %s27, 3
      %p268 = pnand %p266, %p267
      %p269 = pneg %p268
      // Predicated region
      $region25: #{tpu_custom_call.1} parent=5 // pred_check
        _
      $region26: #{tpu_custom_call.1} parent=5 // pred_check_branch
        %271 = sbr.rel (%p268) target = $region28
      $region27: #{tpu_custom_call.1} parent=5 // pred_region
        %s272 = ssub.s32 %s27, 1
        %s273 = sand.u32 %s54, 1
        %s274 = scalar_lea.sflag [#allocation3], %s273
        %s275 = sand.u32 %s54, 1
        %s276 = smul.addr %s275, 8
        %s277 = scalar_lea.vmem [#allocation2], %s276
        // Predicated region
        $region29: #{tpu_custom_call.1} parent=27 // pred_check
          %p278 = pneg %p67
        $region30: #{tpu_custom_call.1} parent=27 // pred_check_branch
          %280 = sbr.rel (%p278) target = $region32
        $region31: #{tpu_custom_call.1} parent=27 // pred_region
          %282 = dma.done %s274, 128
        $region32: #{tpu_custom_call.1} parent=27 // pred_fallthru
          _
        %s283 = sand.u32 %s80, 1
        %s284 = scalar_lea.sflag [#allocation6], %s283
        %s285 = sand.u32 %s80, 1
        %s286 = smul.addr %s285, 4
        %s287 = scalar_lea.vmem [#allocation5], %s286
        // Predicated region
        $region33: #{tpu_custom_call.1} parent=27 // pred_check
          %p288 = pneg %p93
        $region34: #{tpu_custom_call.1} parent=27 // pred_check_branch
          %290 = sbr.rel (%p288) target = $region36
        $region35: #{tpu_custom_call.1} parent=27 // pred_region
          %292 = dma.done %s284, 64
        $region36: #{tpu_custom_call.1} parent=27 // pred_fallthru
          _
        %s293 = sand.u32 %s54, 1
        %s294 = scalar_lea.sflag [#allocation3], %s293
        %s295 = sand.u32 %s54, 1
        %s296 = smul.addr %s295, 8
        %s297 = scalar_lea.vmem [#allocation2], %s296
        %p298 = pneg %p67
        %p299 = pneg %p64
        %s300 = sand.u32 %s80, 1
        %s301 = scalar_lea.sflag [#allocation6], %s300
        %s302 = sand.u32 %s80, 1
        %s303 = smul.addr %s302, 4
        %s304 = scalar_lea.vmem [#allocation5], %s303
        %p305 = pneg %p93
        %p306 = pneg %p90
        %p307 = pneg %p121
        %p308 = pneg %p118
        %s309 = sand.u32 %s108, 1
        %s310 = scalar_lea.sflag [#allocation4], %s309
        %s311 = sand.u32 %s108, 1
        %s312 = smul.addr %s311, 8
        %s313 = scalar_lea.vmem [#allocation7], %s312
        %p314 = pneg %p149
        %p315 = pneg %p146
        %s316 = sand.u32 %s32, 1
        %s317 = scalar_lea.sflag [#allocation9], %s316
        %s318 = sand.u32 %s136, 1
        %s319 = smul.addr %s318, 8
        %s320 = scalar_lea.vmem [#allocation8], %s319
        %p321 = pneg %p177
        %p322 = pneg %p174
        %s323 = sand.u32 %s32, 1
        %s324 = scalar_lea.sflag [#allocation9], %s323
        %s325 = sand.u32 %s164, 1
        %s326 = smul.addr %s325, 8
        %s327 = scalar_lea.vmem [#allocation10], %s326
        %p328 = pneg %p205
        %p329 = pneg %p202
        %s330 = sand.u32 %s192, 1
        %s331 = scalar_lea.sflag [#allocation12], %s330
        %s332 = sand.u32 %s192, 1
        %s333 = smul.addr %s332, 8
        %s334 = scalar_lea.vmem [#allocation11], %s333
        %v335 = vld [vmem:[%s277] sm:$0xff]
        %v336 = vld [vmem:[%s287] sm:$0xf]
        %v337 = vrcp.pop %v336
        %v338 = vmul.f32 %v336, %v337
        %v339 = vsub.f32 1.0, %v338
        %v340 = vmul.f32 %v337, %v339
        %v341 = vadd.f32 %v337, %v340
        %vm342 = vweird.f32 %v336
        %vm343 = vweird.f32 %v337
        %vm344 = vmor %vm342, %vm343
        %v345 = vsel %vm344, %v337, %v341
        %v346 = vand.u32 2147483647, %v336
        %vm347 = vcmp.eq.f32.partialorder %v346, 8.507059e+37
        %v348 = vand.u32 %v336, 2147483648
        %v349 = vor.u32 1.1754944e-38, %v348
        %v350 = vsel %vm347, %v349, %v345
        %v351 = vmul.f32 1.0, %v350
        %v352 = vmul.f32 %v351, 0.5
        %354 = vst [vmem:[#allocation1] ss:$2 sm:$0xff] %v335
        %v355 = vld.sshfl [vmem:[#allocation1] sm:$0xff pattern:$0x75316420]
        %v356 = vld.sshfl [vmem:[#allocation1 + $0x8] sm:$0xff pattern:$0x75316420]
        %359 = vrot.lane.b32.xlu0 %v355, 112
        %v360 = vpop.permute.xlu0 %359
        %361 = vrot.lane.b32.xlu0 %v356, 112
        %v362 = vpop.permute.xlu0 %361
        %v363 = vlaneseq
        %v364 = vand.u32 %v363, 127
        %vm365 = vcmp.lt.s32.totalorder %v364, 112
        %v366 = vsel %vm365, %v360, %v362
        %v367 = vsel %vm365, %v362, %v360
        %368 = vst [vmem:[#allocation1] ss:$2 sm:$0xff] %v335
        %v369 = vld.sshfl [vmem:[#allocation1] sm:$0xff pattern:$0x75316420]
        %v370 = vld.sshfl [vmem:[#allocation1 + $0x8] sm:$0xff pattern:$0x75316420]
        %373 = vrot.lane.b32.xlu0 %v369, 16
        %v374 = vpop.permute.xlu0 %373
        %375 = vrot.lane.b32.xlu0 %v370, 16
        %v376 = vpop.permute.xlu0 %375
        %vm377 = vcmp.lt.s32.totalorder %v364, 16
        %v378 = vsel %vm377, %v374, %v376
        %v379 = vsel %vm377, %v376, %v374
        %v380 = vadd.s32 %v364, 128
        %vm381 = vcmp.lt.s32.totalorder %v364, 0
        %v382 = vsub.s32 0, %v364
        %v383 = vsel %vm381, %v382, %v364
        %v384 = vshrl.u32 %v383, 4
        %v385 = vand.u32 %v383, 15
        %v386 = vsub.s32 0, %v385
        %v387 = vsel %vm381, %v386, %v385
        %vm388 = vcmp.lt.s32.totalorder %v380, 0
        %v389 = vsub.s32 0, %v380
        %v390 = vsel %vm388, %v389, %v380
        %v391 = vshrl.u32 %v390, 4
        %v392 = vand.u32 %v390, 15
        %v393 = vsub.s32 0, %v392
        %v394 = vsel %vm388, %v393, %v392
        %vm395 = vcmp.ne.s32.totalorder %v387, 0
        %vm396 = vcmp.ne.s32.totalorder %v394, 0
        %vm397 = vcmp.lt.s32.totalorder %v387, 0
        %vm398 = vcmp.lt.s32.totalorder %v394, 0
        %vm399 = vmand %vm397, %vm395
        %vm400 = vmand %vm398, %vm396
        %v401 = vadd.s32 %v387, 16
        %v402 = vadd.s32 %v394, 16
        %v403 = vsel %vm399, %v401, %v387
        %v404 = vsel %vm400, %v402, %v394
        %vm405 = vcmp.eq.s32.totalorder %v403, 15
        %vm406 = vcmp.eq.s32.totalorder %v404, 15
        %407 = vst [vmem:[#allocation1] ss:$2 sm:$0xff] %v335
        %v408 = vld.sshfl [vmem:[#allocation1] sm:$0xff pattern:$0x75316420]
        %v409 = vld.sshfl [vmem:[#allocation1 + $0x8] sm:$0xff pattern:$0x75316420]
        %412 = vrot.lane.b32.xlu0 %v408, 15
        %v413 = vpop.permute.xlu0 %412
        %414 = vrot.lane.b32.xlu0 %v409, 15
        %v415 = vpop.permute.xlu0 %414
        %vm416 = vcmp.lt.s32.totalorder %v364, 15
        %v417 = vsel %vm416, %v413, %v415
        %v418 = vsel %vm416, %v415, %v413
        %419 = vst [vmem:[#allocation1] ss:$2 sm:$0xff] %v335
        %v420 = vld.sshfl [vmem:[#allocation1] sm:$0xff pattern:$0x75316420]
        %v421 = vld.sshfl [vmem:[#allocation1 + $0x8] sm:$0xff pattern:$0x75316420]
        %424 = vrot.lane.b32.xlu0 %v420, 127
        %v425 = vpop.permute.xlu0 %424
        %426 = vrot.lane.b32.xlu0 %v421, 127
        %v427 = vpop.permute.xlu0 %426
        %vm428 = vcmp.lt.s32.totalorder %v364, 127
        %v429 = vsel %vm428, %v425, %v427
        %v430 = vsel %vm428, %v427, %v425
        %v431 = vsel %vm405, 1, 0
        %v432 = vsel %vm406, 1, 0
        %vm433 = vcmp.eq.s32.totalorder %v431, 1
        %vm434 = vcmp.eq.s32.totalorder %v432, 1
        %v435 = vsel %vm433, %v418, %v429
        %v436 = vsel %vm434, %v417, %v430
        %vm437 = vcmp.eq.s32.totalorder %v403, 0
        %vm438 = vcmp.eq.s32.totalorder %v404, 0
        %439 = vst [vmem:[#allocation1] ss:$2 sm:$0xff] %v335
        %v440 = vld.sshfl [vmem:[#allocation1] sm:$0xff pattern:$0x75316420]
        %v441 = vld.sshfl [vmem:[#allocation1 + $0x8] sm:$0xff pattern:$0x75316420]
        %444 = vrot.lane.b32.xlu0 %v440, 113
        %v445 = vpop.permute.xlu0 %444
        %446 = vrot.lane.b32.xlu0 %v441, 113
        %v447 = vpop.permute.xlu0 %446
        %vm448 = vcmp.lt.s32.totalorder %v364, 113
        %v449 = vsel %vm448, %v445, %v447
        %v450 = vsel %vm448, %v447, %v445
        %451 = vst [vmem:[#allocation1] ss:$2 sm:$0xff] %v335
        %v452 = vld.sshfl [vmem:[#allocation1] sm:$0xff pattern:$0x75316420]
        %v453 = vld.sshfl [vmem:[#allocation1 + $0x8] sm:$0xff pattern:$0x75316420]
        %456 = vrot.lane.b32.xlu0 %v452, 1
        %v457 = vpop.permute.xlu0 %456
        %458 = vrot.lane.b32.xlu0 %v453, 1
        %v459 = vpop.permute.xlu0 %458
        %vm460 = vcmp.lt.s32.totalorder %v364, 1
        %v461 = vsel %vm460, %v457, %v459
        %v462 = vsel %vm460, %v459, %v457
        %v463 = vsel %vm437, 1, 0
        %v464 = vsel %vm438, 1, 0
        %vm465 = vcmp.eq.s32.totalorder %v463, 1
        %vm466 = vcmp.eq.s32.totalorder %v464, 1
        %v467 = vsel %vm465, %v449, %v462
        %v468 = vsel %vm466, %v450, %v461
        %469 = vst [vmem:[#allocation1] ss:$2 sm:$0xff] %v335
        %v470 = vld.sshfl [vmem:[#allocation1] sm:$0xff pattern:$0x75316420]
        %v471 = vld.sshfl [vmem:[#allocation1 + $0x8] sm:$0xff pattern:$0x75316420]
        %v474 = vsub.f32 %v366, %v470
        %v475 = vsub.f32 %v367, %v471
        %v477 = vperm.slane %v351, 0
        %v478 = vperm.slane %v351, 2
        %v481 = vperm.slane %v477, 0
        %v482 = vperm.slane %v478, 0
        %v483 = vmul.f32 %v474, %v481
        %v484 = vmul.f32 %v475, %v482
        %v487 = vrot.slane %v484, 4
        %vm488 = vcmask 1043456
        %v489 = vsel %vm488, %v483, %v487
        %491 = vst [vmem:[%s313] sm:$0xff] %v489
        %492 = vst [vmem:[#allocation1] ss:$2 sm:$0xff] %v335
        %v493 = vld.sshfl [vmem:[#allocation1] sm:$0xff pattern:$0x75316420]
        %v494 = vld.sshfl [vmem:[#allocation1 + $0x8] sm:$0xff pattern:$0x75316420]
        %v497 = vsub.f32 %v435, %v493
        %v498 = vsub.f32 %v436, %v494
        %v499 = vperm.slane %v351, 1
        %v500 = vperm.slane %v351, 3
        %v503 = vperm.slane %v499, 1
        %v504 = vperm.slane %v500, 1
        %v505 = vmul.f32 %v497, %v503
        %v506 = vmul.f32 %v498, %v504
        %v509 = vrot.slane %v506, 4
        %v510 = vsel %vm488, %v505, %v509
        %512 = vst [vmem:[%s320] sm:$0xff] %v510
        %v513 = vsub.f32 %v366, %v379
        %v514 = vsub.f32 %v367, %v378
        %v516 = vperm.slane %v352, 0
        %v517 = vperm.slane %v352, 2
        %v520 = vperm.slane %v516, 0
        %v521 = vperm.slane %v517, 0
        %v522 = vmul.f32 %v513, %v520
        %v523 = vmul.f32 %v514, %v521
        %v526 = vrot.slane %v523, 4
        %v527 = vsel %vm488, %v522, %v526
        %529 = vst [vmem:[%s327] sm:$0xff] %v527
        %v530 = vsub.f32 %v435, %v467
        %v531 = vsub.f32 %v436, %v468
        %v532 = vperm.slane %v352, 1
        %v533 = vperm.slane %v352, 3
        %v536 = vperm.slane %v532, 1
        %v537 = vperm.slane %v533, 1
        %v538 = vmul.f32 %v530, %v536
        %v539 = vmul.f32 %v531, %v537
        %v542 = vrot.slane %v539, 4
        %v543 = vsel %vm488, %v538, %v542
        %545 = vst [vmem:[%s334] sm:$0xff] %v543
        %s546 = sand.u32 %s108, 1
        %s547 = scalar_lea.sflag [#allocation4], %s546
        %s548 = sand.u32 %s108, 1
        %s549 = smul.addr %s548, 8
        %s550 = scalar_lea.vmem [#allocation7], %s549
        %s551 = sand.u32 %s32, 1
        %s552 = scalar_lea.sflag [#allocation9], %s551
        %s553 = sand.u32 %s136, 1
        %s554 = smul.addr %s553, 8
        %s555 = scalar_lea.vmem [#allocation8], %s554
        %s556 = sand.u32 %s32, 1
        %s557 = scalar_lea.sflag [#allocation9], %s556
        %s558 = sand.u32 %s164, 1
        %s559 = smul.addr %s558, 8
        %s560 = scalar_lea.vmem [#allocation10], %s559
        %s561 = sand.u32 %s192, 1
        %s562 = scalar_lea.sflag [#allocation12], %s561
        %s563 = sand.u32 %s192, 1
        %s564 = smul.addr %s563, 8
        %s565 = scalar_lea.vmem [#allocation11], %s564
        // Predicated region
        $region37: #{tpu_custom_call.1} parent=27 // pred_check
          %p566 = pneg %p118
        $region38: #{tpu_custom_call.1} parent=27 // pred_check_branch
          %568 = sbr.rel (%p566) target = $region40
        $region39: #{tpu_custom_call.1} parent=27 // pred_region
          %570 = vsyncadd %s547, 0
          %s571 = smul.addr %s37, 2
          %s572 = smul.addr %s36, 2
          %s573 = sadd.s32 %s571, %s572
          %s574 = smul.addr %s573, 4
          %s575 = scalar_lea.hbm %s2, %s574
          %s577 = sshll.u32 %s550, 4
          %s578 = int_to_ptr.vmem [resolvable:$true] %s577
          %s579 = sshll.u32 %s575, 4
          %s580 = int_to_ptr.hbm [resolvable:$true] %s579
          %582 = dma.vmem_to_hbm [thread:$0]  %s578, 128, %s580, %s547
        $region40: #{tpu_custom_call.1} parent=27 // pred_fallthru
          _
        // Predicated region
        $region41: #{tpu_custom_call.1} parent=27 // pred_check
          %p583 = pneg %p146
        $region42: #{tpu_custom_call.1} parent=27 // pred_check_branch
          %585 = sbr.rel (%p583) target = $region44
        $region43: #{tpu_custom_call.1} parent=27 // pred_region
          %587 = vsyncadd %s552, 0
          %s588 = smul.addr %s37, 2
          %s589 = smul.addr %s36, 2
          %s590 = sadd.s32 %s588, %s589
          %s591 = smul.addr %s590, 4
          %s592 = scalar_lea.hbm %s3, %s591
          %s594 = sshll.u32 %s555, 4
          %s595 = int_to_ptr.vmem [resolvable:$true] %s594
          %s596 = sshll.u32 %s592, 4
          %s597 = int_to_ptr.hbm [resolvable:$true] %s596
          %599 = dma.vmem_to_hbm [thread:$0]  %s595, 128, %s597, %s552
        $region44: #{tpu_custom_call.1} parent=27 // pred_fallthru
          _
        // Predicated region
        $region45: #{tpu_custom_call.1} parent=27 // pred_check
          %p600 = pneg %p174
        $region46: #{tpu_custom_call.1} parent=27 // pred_check_branch
          %602 = sbr.rel (%p600) target = $region48
        $region47: #{tpu_custom_call.1} parent=27 // pred_region
          %604 = vsyncadd %s557, 0
          %s605 = smul.addr %s37, 2
          %s606 = smul.addr %s36, 2
          %s607 = sadd.s32 %s605, %s606
          %s608 = smul.addr %s607, 4
          %s609 = scalar_lea.hbm %s4, %s608
          %s611 = sshll.u32 %s560, 4
          %s612 = int_to_ptr.vmem [resolvable:$true] %s611
          %s613 = sshll.u32 %s609, 4
          %s614 = int_to_ptr.hbm [resolvable:$true] %s613
          %616 = dma.vmem_to_hbm [thread:$0]  %s612, 128, %s614, %s557
        $region48: #{tpu_custom_call.1} parent=27 // pred_fallthru
          _
        // Predicated region
        $region49: #{tpu_custom_call.1} parent=27 // pred_check
          %p617 = pneg %p202
        $region50: #{tpu_custom_call.1} parent=27 // pred_check_branch
          %619 = sbr.rel (%p617) target = $region52
        $region51: #{tpu_custom_call.1} parent=27 // pred_region
          %621 = vsyncadd %s562, 0
          %s622 = smul.addr %s37, 2
          %s623 = smul.addr %s36, 2
          %s624 = sadd.s32 %s622, %s623
          %s625 = smul.addr %s624, 4
          %s626 = scalar_lea.hbm %s5, %s625
          %s628 = sshll.u32 %s565, 4
          %s629 = int_to_ptr.vmem [resolvable:$true] %s628
          %s630 = sshll.u32 %s626, 4
          %s631 = int_to_ptr.hbm [resolvable:$true] %s630
          %633 = dma.vmem_to_hbm [thread:$0]  %s629, 128, %s631, %s562
        $region52: #{tpu_custom_call.1} parent=27 // pred_fallthru
          _
      $region28: #{tpu_custom_call.1} parent=5 // pred_fallthru
        _
      %p634 = scmp.le.s32.totalorder 2, %s27
      // Predicated region
      $region53: #{tpu_custom_call.1} parent=5 // pred_check
        %p635 = pneg %p634
      $region54: #{tpu_custom_call.1} parent=5 // pred_check_branch
        %637 = sbr.rel (%p635) target = $region56
      $region55: #{tpu_custom_call.1} parent=5 // pred_region
        %s638 = ssub.s32 %s27, 2
        // Predicated region
        $region57: #{tpu_custom_call.1} parent=55 // pred_check
          %p639 = pneg %p124
        $region58: #{tpu_custom_call.1} parent=55 // pred_check_branch
          %641 = sbr.rel (%p639) target = $region60
        $region59: #{tpu_custom_call.1} parent=55 // pred_region
          %s642 = sand.u32 %s109, 1
          %s643 = scalar_lea.sflag [#allocation4], %s642
          %s644 = sand.u32 %s109, 1
          %s645 = smul.addr %s644, 8
          %s646 = scalar_lea.vmem [#allocation7], %s645
          %648 = dma.done %s643, 128
        $region60: #{tpu_custom_call.1} parent=55 // pred_fallthru
          _
        // Predicated region
        $region61: #{tpu_custom_call.1} parent=55 // pred_check
          %p649 = pneg %p152
        $region62: #{tpu_custom_call.1} parent=55 // pred_check_branch
          %651 = sbr.rel (%p649) target = $region64
        $region63: #{tpu_custom_call.1} parent=55 // pred_region
          %s652 = sand.u32 %s33, 1
          %s653 = scalar_lea.sflag [#allocation9], %s652
          %s654 = sand.u32 %s137, 1
          %s655 = smul.addr %s654, 8
          %s656 = scalar_lea.vmem [#allocation8], %s655
          %658 = dma.done %s653, 128
        $region64: #{tpu_custom_call.1} parent=55 // pred_fallthru
          _
        // Predicated region
        $region65: #{tpu_custom_call.1} parent=55 // pred_check
          %p659 = pneg %p180
        $region66: #{tpu_custom_call.1} parent=55 // pred_check_branch
          %661 = sbr.rel (%p659) target = $region68
        $region67: #{tpu_custom_call.1} parent=55 // pred_region
          %s662 = sand.u32 %s33, 1
          %s663 = scalar_lea.sflag [#allocation9], %s662
          %s664 = sand.u32 %s165, 1
          %s665 = smul.addr %s664, 8
          %s666 = scalar_lea.vmem [#allocation10], %s665
          %668 = dma.done %s663, 128
        $region68: #{tpu_custom_call.1} parent=55 // pred_fallthru
          _
        // Predicated region
        $region69: #{tpu_custom_call.1} parent=55 // pred_check
          %p669 = pneg %p208
        $region70: #{tpu_custom_call.1} parent=55 // pred_check_branch
          %671 = sbr.rel (%p669) target = $region72
        $region71: #{tpu_custom_call.1} parent=55 // pred_region
          %s672 = sand.u32 %s193, 1
          %s673 = scalar_lea.sflag [#allocation12], %s672
          %s674 = sand.u32 %s193, 1
          %s675 = smul.addr %s674, 8
          %s676 = scalar_lea.vmem [#allocation11], %s675
          %678 = dma.done %s673, 128
        $region72: #{tpu_custom_call.1} parent=55 // pred_fallthru
          _
      $region56: #{tpu_custom_call.1} parent=5 // pred_fallthru
        _
    $region6: #{tpu_custom_call.1} parent=1 // loop_footer
      %s31 = sadd.s32 1, %s27
    $region7: #{tpu_custom_call.1} parent=1 // loop_footer_branch
      %26 = sbr.rel target = $region3
    $region8: #{tpu_custom_call.1} parent=1 // loop_exit
      _
    %679 = vsyncpa [#allocation3], 1
    %s680 = scalar_lea.sflag [#allocation3], 1
    %681 = vsyncpa %s680, 1
    %682 = vsyncpa [#allocation6], 1
    %s683 = scalar_lea.sflag [#allocation6], 1
    %684 = vsyncpa %s683, 1
    %685 = vsyncpa [#allocation4], 1
    %s686 = scalar_lea.sflag [#allocation4], 1
    %687 = vsyncpa %s686, 1
    %688 = vsyncpa [#allocation9], 1
    %s689 = scalar_lea.sflag [#allocation9], 1
    %690 = vsyncpa %s689, 1
    %691 = vsyncpa [#allocation12], 1
    %s692 = scalar_lea.sflag [#allocation12], 1
    %693 = vsyncpa %s692, 1

</llo_original>
